<compile_context>
chip_gen: v5e
topology: v5e:2x2
jax: 0.10.0
libtpu: 0.0.40
codegen_flags: <defaults>
</compile_context>

<pallas_src>
import functools

import jax
import jax.numpy as jnp
from jax.experimental import pallas as pl
from jax.experimental.pallas import tpu as pltpu


def planar_flow_kernel(params_ref, z_ref, o_ref):
    # params_ref: SMEM f32[2*d + 1] = [w_0..w_{d-1}, u_0..u_{d-1}, b]
    # z_ref, o_ref: (d, tile_n) VMEM tiles, lane-dense (tile_n % 128 == 0).
    d = z_ref.shape[0]
    b = params_ref[2 * d]

    # arg = sum_i w_i * z_i + b  -- kept as VPU scalar-mul + adds
    # (d is small & static; avoid an XLU cross-lane reduce and the MXU).
    arg = params_ref[0] * z_ref[0:1, :]
    for i in range(1, d):
        arg = arg + params_ref[i] * z_ref[i:i + 1, :]
    t = jnp.tanh(arg + b)                              # (1, tile_n) on the EUP

    # f_z_i = z_i + u_i * tanh(arg); per-row lane-dense stores.
    for i in range(d):
        o_ref[i:i + 1, :] = z_ref[i:i + 1, :] + params_ref[d + i] * t


@functools.partial(jax.jit, static_argnames=("block_cols",))
def planar_flow(z, u, w, b, *, block_cols=8192):
    """z: (N, d) f32; u, w: (1, d) f32; b: (1,) f32 -> f_z: (N, d) f32."""
    n, d = z.shape

    # Lane-dense presentation: batch -> lanes (layout plumbing only).
    z_t = z.T                                          # (d, N)

    # Lane tile: multiple of 128, at most block_cols, covering N.
    tile_n = min(block_cols, pl.cdiv(n, 128) * 128)
    n_pad = pl.cdiv(n, tile_n) * tile_n
    if n_pad != n:
        z_t = jnp.pad(z_t, ((0, 0), (0, n_pad - n)))

    # All parameters in one flat SMEM array: [w (d), u (d), b (1)].
    params = jnp.concatenate(
        [w.reshape(-1), u.reshape(-1), b.reshape(-1)]).astype(z.dtype)

    grid = (n_pad // tile_n,)
    out_t = pl.pallas_call(
        planar_flow_kernel,
        out_shape=jax.ShapeDtypeStruct((d, n_pad), z.dtype),
        grid=grid,
        in_specs=[
            pl.BlockSpec(memory_space=pltpu.MemorySpace.SMEM),    # params
            pl.BlockSpec((d, tile_n), lambda i: (0, i)),          # z tile
        ],
        out_specs=pl.BlockSpec((d, tile_n), lambda i: (0, i)),
        compiler_params=pltpu.CompilerParams(
            dimension_semantics=("parallel",)),
    )(params, z_t)

    # Drop the padding and restore the (N, d) layout of the PyTorch module.
    return out_t[:, :n].T


def planar_flow_ref(z, u, w, b):
    arg = z @ w.T + b                                  # (N, 1)
    return z + u * jnp.tanh(arg)


if __name__ == "__main__":
    key = jax.random.PRNGKey(0)
    k_z, k_u, k_w, k_z2 = jax.random.split(key, 4)

    d = 3
    init_sigma = 0.01

    # Deterministic parameter init mirroring the PyTorch __init__ shapes.
    u = (init_sigma * jax.random.normal(k_u, (1, d))).astype(jnp.float32)
    w = (init_sigma * jax.random.normal(k_w, (1, d))).astype(jnp.float32)
    b = jnp.zeros((1,), dtype=jnp.float32)

    # Small batch (as in the module's intended use).
    n = 16
    z = jax.random.normal(k_z, (n, d), dtype=jnp.float32)
    out = jax.block_until_ready(planar_flow(z, u, w, b))
    ref = planar_flow_ref(z, u, w, b)
    assert out.shape == (n, d)
    assert jnp.allclose(out, ref, atol=1e-5, rtol=1e-5), "mismatch vs reference"

    # Non-multiple-of-128 batch exercises the padding/masking path.
    n2 = 1000
    z2 = jax.random.normal(k_z2, (n2, d), dtype=jnp.float32)
    out2 = jax.block_until_ready(planar_flow(z2, u, w, b))
    ref2 = planar_flow_ref(z2, u, w, b)
    assert out2.shape == (n2, d)
    assert jnp.allclose(out2, ref2, atol=1e-5, rtol=1e-5), "mismatch (padded N)"

    print("KERNEL_OK")
</pallas_src>

<mosaic_0001>
module attributes {stable_mosaic.version = 11 : i64} {
  func.func @planar_flow_kernel(%arg0: i32, %arg1: memref<7xf32, #tpu.memory_space<smem>>, %arg2: memref<3x128xf32, #tpu.memory_space<vmem>>, %arg3: memref<3x128xf32, #tpu.memory_space<vmem>>) attributes {dimension_semantics = [#tpu.dimension_semantics<parallel>], iteration_bounds = array<i64: 1>, scalar_prefetch = 0 : i64, scratch_operands = 0 : i64, tpu.core_type = #tpu.core_type<tc>, window_params = [{transform_indices = @transform_0, window_bounds = array<i64: 7>}, {transform_indices = @transform_1, window_bounds = array<i64: 3, 128>}, {transform_indices = @transform_2, window_bounds = array<i64: 3, 128>}]} {
    %c6 = arith.constant 6 : index
    %0 = memref.load %arg1[%c6] : memref<7xf32, #tpu.memory_space<smem>>
    %c0 = arith.constant 0 : index
    %1 = memref.load %arg1[%c0] : memref<7xf32, #tpu.memory_space<smem>>
    %c0_0 = arith.constant 0 : index
    %c0_1 = arith.constant 0 : index
    %2 = vector.load %arg2[%c0_0, %c0_1] : memref<3x128xf32, #tpu.memory_space<vmem>>, vector<1x128xf32>
    %3 = vector.broadcast %1 : f32 to vector<1x128xf32>
    %4 = arith.mulf %3, %2 : vector<1x128xf32>
    %c1 = arith.constant 1 : index
    %5 = memref.load %arg1[%c1] : memref<7xf32, #tpu.memory_space<smem>>
    %c1_2 = arith.constant 1 : index
    %c0_3 = arith.constant 0 : index
    %6 = vector.load %arg2[%c1_2, %c0_3] : memref<3x128xf32, #tpu.memory_space<vmem>>, vector<1x128xf32>
    %7 = vector.broadcast %5 : f32 to vector<1x128xf32>
    %8 = arith.mulf %7, %6 : vector<1x128xf32>
    %9 = arith.addf %4, %8 : vector<1x128xf32>
    %c2 = arith.constant 2 : index
    %10 = memref.load %arg1[%c2] : memref<7xf32, #tpu.memory_space<smem>>
    %c2_4 = arith.constant 2 : index
    %c0_5 = arith.constant 0 : index
    %11 = vector.load %arg2[%c2_4, %c0_5] : memref<3x128xf32, #tpu.memory_space<vmem>>, vector<1x128xf32>
    %12 = vector.broadcast %10 : f32 to vector<1x128xf32>
    %13 = arith.mulf %12, %11 : vector<1x128xf32>
    %14 = arith.addf %9, %13 : vector<1x128xf32>
    %15 = vector.broadcast %0 : f32 to vector<1x128xf32>
    %16 = arith.addf %14, %15 : vector<1x128xf32>
    %17 = math.tanh %16 : vector<1x128xf32>
    %c0_6 = arith.constant 0 : index
    %c0_7 = arith.constant 0 : index
    %18 = vector.load %arg2[%c0_6, %c0_7] : memref<3x128xf32, #tpu.memory_space<vmem>>, vector<1x128xf32>
    %c3 = arith.constant 3 : index
    %19 = memref.load %arg1[%c3] : memref<7xf32, #tpu.memory_space<smem>>
    %20 = vector.broadcast %19 : f32 to vector<1x128xf32>
    %21 = arith.mulf %20, %17 : vector<1x128xf32>
    %22 = arith.addf %18, %21 : vector<1x128xf32>
    %c0_8 = arith.constant 0 : index
    %c0_9 = arith.constant 0 : index
    %23 = vector.load %arg3[%c0_8, %c0_9] : memref<3x128xf32, #tpu.memory_space<vmem>>, vector<1x128xf32>
    tpu.vector_store %arg3[%c0_8, %c0_9], %22 {strides = array<i32>} : memref<3x128xf32, #tpu.memory_space<vmem>>, vector<1x128xf32>,
    %c1_10 = arith.constant 1 : index
    %c0_11 = arith.constant 0 : index
    %24 = vector.load %arg2[%c1_10, %c0_11] : memref<3x128xf32, #tpu.memory_space<vmem>>, vector<1x128xf32>
    %c4 = arith.constant 4 : index
    %25 = memref.load %arg1[%c4] : memref<7xf32, #tpu.memory_space<smem>>
    %26 = vector.broadcast %25 : f32 to vector<1x128xf32>
    %27 = arith.mulf %26, %17 : vector<1x128xf32>
    %28 = arith.addf %24, %27 : vector<1x128xf32>
    %c1_12 = arith.constant 1 : index
    %c0_13 = arith.constant 0 : index
    %29 = vector.load %arg3[%c1_12, %c0_13] : memref<3x128xf32, #tpu.memory_space<vmem>>, vector<1x128xf32>
    tpu.vector_store %arg3[%c1_12, %c0_13], %28 {strides = array<i32>} : memref<3x128xf32, #tpu.memory_space<vmem>>, vector<1x128xf32>,
    %c2_14 = arith.constant 2 : index
    %c0_15 = arith.constant 0 : index
    %30 = vector.load %arg2[%c2_14, %c0_15] : memref<3x128xf32, #tpu.memory_space<vmem>>, vector<1x128xf32>
    %c5 = arith.constant 5 : index
    %31 = memref.load %arg1[%c5] : memref<7xf32, #tpu.memory_space<smem>>
    %32 = vector.broadcast %31 : f32 to vector<1x128xf32>
    %33 = arith.mulf %32, %17 : vector<1x128xf32>
    %34 = arith.addf %30, %33 : vector<1x128xf32>
    %c2_16 = arith.constant 2 : index
    %c0_17 = arith.constant 0 : index
    %35 = vector.load %arg3[%c2_16, %c0_17] : memref<3x128xf32, #tpu.memory_space<vmem>>, vector<1x128xf32>
    tpu.vector_store %arg3[%c2_16, %c0_17], %34 {strides = array<i32>} : memref<3x128xf32, #tpu.memory_space<vmem>>, vector<1x128xf32>,
    return
  }
  func.func @transform_0(%arg0: i32) -> i32 {
    %c0_i32 = arith.constant 0 : i32
    %c0_i32_0 = arith.constant 0 : i32
    return %c0_i32 : i32
  }
  func.func @transform_1(%arg0: i32) -> (i32, i32) {
    %c0_i32 = arith.constant 0 : i32
    %c0_i32_0 = arith.constant 0 : i32
    return %c0_i32, %arg0 : i32, i32
  }
  func.func @transform_2(%arg0: i32) -> (i32, i32) {
    %c0_i32 = arith.constant 0 : i32
    %c0_i32_0 = arith.constant 0 : i32
    return %c0_i32, %arg0 : i32, i32
  }
}

</mosaic_0001>

<llo_original>
// kernel: planar_flow.1
$region0: #{planar_flow.1}
  #allocation0 [shape = 'u32[]', space=smem, size = 0x4, offset = 0x4, fixed_abs, tag = 'smem constant byte address 0x4 - core index']
  #allocation1 [shape = 'u32[72,128]{1,0:T(1,128)}', space=vmem, size = 0x9000, scoped, tag = 'internal scratch']
  %s0 = inlined_call_operand.vmem [shape: f32[7], index: 0, kind: input, shape index: {}]
  %s1 = inlined_call_operand.vmem [shape: f32[3,128], index: 1, kind: input, shape index: {}]
  %s2 = inlined_call_operand.vmem [shape: f32[3,128], index: 2, kind: output, shape index: {}]
  %s3 = sld [smem:[#allocation0]]
  $region22: #{planar_flow.1} parent=0
    _
  %s5 = ssub.s32 1, %s3
  %s6 = scalar_select 0, %s5, %s3
  $region1: #{planar_flow.1} parent=0
    #allocation2 [shape = 'u8[512]{0}', space=smem, size = 0x200, scoped, tag = 'input window, operand 0, single buffered']
    #allocation3 [shape = 's32[1]{0}', space=sflag, size = 0x4, scoped, tag = 'scoped memory for planar_flow.1']
    %7 = vsyncpa [#allocation3], 0
    // Predicated region
    $region2: #{planar_flow.1} parent=1 // pred_check
      _
    $region3: #{planar_flow.1} parent=1 // pred_check_branch
      %9 = sbr.rel (0) target = $region5
    $region4: #{planar_flow.1} parent=1 // pred_region
      %11 = vsyncadd [#allocation3], 0
      %s13 = sshll.u32 %s0, 4
      %s14 = int_to_ptr.vmem [resolvable:$true] %s13
      %16 = dma.vmem_to_smem %s14, 16, [#allocation2], [#allocation3]
    $region5: #{planar_flow.1} parent=1 // pred_fallthru
      _
    // Predicated region
    $region6: #{planar_flow.1} parent=1 // pred_check
      _
    $region7: #{planar_flow.1} parent=1 // pred_check_branch
      %18 = sbr.rel (0) target = $region9
    $region8: #{planar_flow.1} parent=1 // pred_region
      _
    $region9: #{planar_flow.1} parent=1 // pred_fallthru
      _
    // Predicated region
    $region10: #{planar_flow.1} parent=1 // pred_check
      _
    $region11: #{planar_flow.1} parent=1 // pred_check_branch
      %20 = sbr.rel (0) target = $region13
    $region12: #{planar_flow.1} parent=1 // pred_region
      %22 = dma.done [#allocation3], 16
    $region13: #{planar_flow.1} parent=1 // pred_fallthru
      _
    %23 = sfence
    %s24 = sld [smem:[#allocation2 + $0x6]]
    %s25 = sld [smem:[#allocation2]]
    %v26 = vld [vmem:[%s1] sm:$0x1]
    %v27 = vstv %s25
    %v28 = vmul.f32 %v27, %v26
    %s29 = sld [smem:[#allocation2 + $0x1]]
    %v30 = vld [vmem:[%s1 + $0x1] sm:$0x1]
    %v31 = vstv %s29
    %v32 = vmul.f32 %v31, %v30
    %v33 = vadd.f32 %v28, %v32
    %s34 = sld [smem:[#allocation2 + $0x2]]
    %v35 = vld [vmem:[%s1 + $0x2] sm:$0x1]
    %v36 = vstv %s34
    %v37 = vmul.f32 %v36, %v35
    %v38 = vadd.f32 %v33, %v37
    %v39 = vstv %s24
    %v40 = vadd.f32 %v38, %v39
    %v41 = vtanh.pop %v40
    %s42 = sld [smem:[#allocation2 + $0x3]]
    %v43 = vstv %s42
    %v44 = vmul.f32 %v43, %v41
    %v45 = vadd.f32 %v26, %v44
    %46 = vst [vmem:[%s2] sm:$0x1] %v45
    %v47 = vld [vmem:[%s1 + $0x1] sm:$0x1]
    %s48 = sld [smem:[#allocation2 + $0x4]]
    %v49 = vstv %s48
    %v50 = vmul.f32 %v49, %v41
    %v51 = vadd.f32 %v47, %v50
    %52 = vst [vmem:[%s2 + $0x1] sm:$0x1] %v51
    %v53 = vld [vmem:[%s1 + $0x2] sm:$0x1]
    %s54 = sld [smem:[#allocation2 + $0x5]]
    %v55 = vstv %s54
    %v56 = vmul.f32 %v55, %v41
    %v57 = vadd.f32 %v53, %v56
    %58 = vst [vmem:[%s2 + $0x2] sm:$0x1] %v57
    // Predicated region
    $region14: #{planar_flow.1} parent=1 // pred_check
      _
    $region15: #{planar_flow.1} parent=1 // pred_check_branch
      %60 = sbr.rel (0) target = $region17
    $region16: #{planar_flow.1} parent=1 // pred_region
      _
    $region17: #{planar_flow.1} parent=1 // pred_fallthru
      _
    // Predicated region
    $region18: #{planar_flow.1} parent=1 // pred_check
      _
    $region19: #{planar_flow.1} parent=1 // pred_check_branch
      %62 = sbr.rel (0) target = $region21
    $region20: #{planar_flow.1} parent=1 // pred_region
      _
    $region21: #{planar_flow.1} parent=1 // pred_fallthru
      _
    %63 = vsyncpa [#allocation3], 1

</llo_original>
